<compile_context>
chip_gen: v5e
topology: v5e:2x2
jax: 0.10.0
libtpu: 0.0.40
codegen_flags: <defaults>
</compile_context>

<pallas_src>
import functools
import time

import jax
import jax.numpy as jnp
import numpy as np
from jax.experimental import pallas as pl
from jax.experimental.pallas import tpu as pltpu


_LANES = 1024                 # lane-dense last dim (multiple of 128)
_MAX_BLOCK_ROWS = 2048        # 8 MiB output tile (16 MiB double-buffered)
_SUB_ROWS = 256               # 1 MiB per-chunk working set inside the kernel
_VMEM_LIMIT_BYTES = 32 * 1024 * 1024  # covers v5e's 16 MiB default scoped VMEM


def _round_up(x: int, m: int) -> int:
    return ((x + m - 1) // m) * m


def _layout(num_values: int):
    """Minimal-padding (rows, _LANES) layout, block rows and grid for N values."""
    rows_needed = pl.cdiv(max(int(num_values), 1), _LANES)
    rows8 = _round_up(rows_needed, 8)            # sublane multiple; no pow-2 bucketing
    grid = max(1, pl.cdiv(rows8, _MAX_BLOCK_ROWS))
    if grid == 1 and rows8 >= 16:
        grid = 2                                 # >=2 steps: v7x megacore + pipeline overlap
    block_rows = _round_up(pl.cdiv(rows8, grid), 8)
    rows = block_rows * grid                     # waste <= 8*grid rows (~32 KiB per step)
    return rows, block_rows, grid


# ----------------------------------------------------------------------------
# Pallas kernels
# ----------------------------------------------------------------------------
def _single_ttl_kernel(score_ref, out_ref):
    # score_ref: SMEM (1,) int32 = single_ttl + hour (runtime scalar, not baked)
    # out_ref:   VMEM (block_rows, _LANES) int32
    out_ref[...] = jnp.full(out_ref.shape, score_ref[0], dtype=jnp.int32)


def _lin_iota(n_rows: int, c: int):
    # Flat (row-major) index of each element within a chunk, int32.
    row = jax.lax.broadcasted_iota(jnp.int32, (n_rows, c), 0)
    lane = jax.lax.broadcasted_iota(jnp.int32, (n_rows, c), 1)
    return row * c + lane


def _fill_chunk(off_ref, val_ref, out_ref, lin, row_start, tile_base):
    """Fill out_ref[row_start:row_start+n_rows, :] with repeat_interleave'd vals."""
    n_rows, c = lin.shape
    num_features = off_ref.shape[0]
    rows_sl = pl.ds(row_start, n_rows)           # static slice, 8-row aligned
    base = tile_base + row_start * c             # flat offset of chunk start

    if num_features == 1:
        out_ref[rows_sl, :] = jnp.full((n_rows, c), val_ref[0], dtype=jnp.int32)
        return

    base_end = base + n_rows * c

    # Segment narrowing: F scalar compares on the scalar unit (~free) find
    #   nlo = #{f : off[f] <= base}      -> feature covering the chunk start
    #   nhi = #{f : off[f] <  base_end}  -> boundaries intersecting the chunk
    nlo = jnp.int32(0)
    nhi = jnp.int32(0)
    for f in range(num_features):
        o = off_ref[f]
        nlo = nlo + (o <= base).astype(jnp.int32)
        nhi = nhi + (o < base_end).astype(jnp.int32)

    # Init: value of the feature covering the chunk start (off[0] == 0 => nlo >= 1).
    out_ref[rows_sl, :] = jnp.full((n_rows, c), val_ref[nlo - 1], dtype=jnp.int32)

    # One vector compare+select per boundary strictly inside this chunk
    # (f in [nlo, nhi), typically 0-2). Zero-length features (equal offsets)
    # are handled by later selects overriding earlier ones, matching
    # repeat_interleave order.
    @pl.loop(nlo, nhi)
    def _(f):
        cur = out_ref[rows_sl, :]
        out_ref[rows_sl, :] = jnp.where(lin >= off_ref[f] - base, val_ref[f], cur)


def _per_feature_ttl_kernel(off_ref, val_ref, out_ref):
    # off_ref: SMEM (F,) int32 -- exclusive cumsum of feature_split (segment starts)
    # val_ref: SMEM (F,) int32 -- per_feature_ttl + hour (folded on host)
    # out_ref: VMEM (block_rows, _LANES) int32
    block_r, c = out_ref.shape
    tile_base = pl.program_id(0) * (block_r * c)

    sub = min(_SUB_ROWS, block_r)
    n_full = block_r // sub
    rem = block_r - n_full * sub                 # multiple of 8 (block_r, sub are)

    # Chunked processing keeps every intermediate <= 1 MiB (no full-tile temps).
    lin = _lin_iota(sub, c)
    for k in range(n_full):
        _fill_chunk(off_ref, val_ref, out_ref, lin, k * sub, tile_base)
    if rem:
        lin_rem = _lin_iota(rem, c)
        _fill_chunk(off_ref, val_ref, out_ref, lin_rem, n_full * sub, tile_base)


# ----------------------------------------------------------------------------
# Cached pallas_call builders (compile reuse across calls with same layout)
# ----------------------------------------------------------------------------
@functools.lru_cache(maxsize=None)
def _build_single_ttl_call(rows: int, block_rows: int, grid: int):
    return pl.pallas_call(
        _single_ttl_kernel,
        out_shape=jax.ShapeDtypeStruct((rows, _LANES), jnp.int32),
        grid=(grid,),
        in_specs=[pl.BlockSpec(memory_space=pltpu.SMEM)],
        out_specs=pl.BlockSpec((block_rows, _LANES), lambda i: (i, 0)),
        compiler_params=pltpu.CompilerParams(
            dimension_semantics=("parallel",),
            vmem_limit_bytes=_VMEM_LIMIT_BYTES),
        cost_estimate=pl.CostEstimate(
            flops=0, transcendentals=0, bytes_accessed=4 * rows * _LANES),
    )


@functools.lru_cache(maxsize=None)
def _build_per_feature_call(rows: int, block_rows: int, grid: int, num_features: int):
    return pl.pallas_call(
        _per_feature_ttl_kernel,
        out_shape=jax.ShapeDtypeStruct((rows, _LANES), jnp.int32),
        grid=(grid,),
        in_specs=[
            pl.BlockSpec(memory_space=pltpu.SMEM),
            pl.BlockSpec(memory_space=pltpu.SMEM),
        ],
        out_specs=pl.BlockSpec((block_rows, _LANES), lambda i: (i, 0)),
        compiler_params=pltpu.CompilerParams(
            dimension_semantics=("parallel",),
            vmem_limit_bytes=_VMEM_LIMIT_BYTES),
        cost_estimate=pl.CostEstimate(
            flops=4 * rows * _LANES,
            transcendentals=0,
            bytes_accessed=4 * rows * _LANES),
    )


# ----------------------------------------------------------------------------
# Wrappers
# ----------------------------------------------------------------------------
def single_ttl_score(num_values: int, single_ttl: int, hour: int, strip: bool = True):
    rows, block_rows, grid = _layout(num_values)
    score = np.asarray([int(single_ttl) + int(hour)], dtype=np.int32)  # host; one tiny H2D
    out = _build_single_ttl_call(rows, block_rows, grid)(score)
    if strip:
        # Only to honor the torch (N,) contract; consumers that can take the
        # padded slab should call with strip=False and mask flat index >= N.
        return out.reshape(-1)[:num_values]
    return out


def per_feature_ttl_score(feature_split, per_feature_ttl, hour: int,
                          total_values: int, strip: bool = True):
    rows, block_rows, grid = _layout(total_values)
    if isinstance(feature_split, jax.Array):
        # Device-resident split: keep it on-device (avoid a D2H sync).
        split = feature_split.astype(jnp.int32)
        offsets = jnp.cumsum(split) - split                 # exclusive cumsum
        vals = jnp.asarray(per_feature_ttl, jnp.int32) + jnp.int32(hour)
        num_features = int(split.shape[0])
    else:
        # Usual case: host-resident lengths -> pure NumPy, no extra dispatches.
        split = np.asarray(feature_split, dtype=np.int64)
        offsets = (np.cumsum(split) - split).astype(np.int32)
        vals = (np.asarray(per_feature_ttl, dtype=np.int64) + int(hour)).astype(np.int32)
        num_features = int(split.shape[0])

    out = _build_per_feature_call(rows, block_rows, grid, num_features)(offsets, vals)
    if strip:
        return out.reshape(-1)[:total_values]
    return out


# ----------------------------------------------------------------------------
# Module-equivalent wrapper
# ----------------------------------------------------------------------------
class HashZchThresholdEvictionModuleJax:
    """JAX/Pallas port of HashZchThresholdEvictionModule.forward.

    `feature` is a dict standing in for the JaggedTensor:
        {"values": (N,) int32 ids, "weights": (F,) feature_split lengths}
    # TODO(synk): JaggedTensor container / torch device routing have no Pallas
    # equivalent; a plain dict and the default JAX device stand in for them.
    """

    SINGLE_TTL_EVICTION = "SINGLE_TTL_EVICTION"
    PER_FEATURE_TTL_EVICTION = "PER_FEATURE_TTL_EVICTION"
    LRU_EVICTION = "LRU_EVICTION"

    def __init__(self, policy_name, features, single_ttl=None, per_feature_ttl=None):
        self._policy_name = policy_name
        self._features = features
        self._single_ttl = single_ttl
        self._per_feature_ttl = (
            None if per_feature_ttl is None
            else np.asarray(per_feature_ttl, dtype=np.int32)   # host-resident table
        )
        if policy_name == self.PER_FEATURE_TTL_EVICTION:
            assert self._per_feature_ttl is not None and len(features) == len(
                per_feature_ttl)
        elif policy_name in (self.SINGLE_TTL_EVICTION, self.LRU_EVICTION):
            assert single_ttl is not None and single_ttl > 0

    def __call__(self, feature, return_padded: bool = False):
        # hour stays a runtime scalar (SMEM input) -- never a compile-time constant.
        hour = int(time.time() / 3600)
        if self._policy_name in (self.SINGLE_TTL_EVICTION, self.LRU_EVICTION):
            n = feature["values"].shape[0]                    # static, no device sync
            score = single_ttl_score(n, int(self._single_ttl), hour,
                                     strip=not return_padded)
            return score, hour
        elif self._policy_name == self.PER_FEATURE_TTL_EVICTION:
            n = feature["values"].shape[0]
            score = per_feature_ttl_score(feature["weights"], self._per_feature_ttl,
                                          hour, total_values=n,
                                          strip=not return_padded)
            return score, hour
        else:
            # Base HashZchEvictionScorer: empty score, threshold -1.
            return jnp.zeros((0,), dtype=jnp.int32), -1


# ----------------------------------------------------------------------------
# Demo / self-check
# ----------------------------------------------------------------------------
if __name__ == "__main__":
    key = jax.random.PRNGKey(0)

    # Small jagged feature: 3 features with lengths [5, 7, 4] -> 16 ids total.
    feature_split = np.array([5, 7, 4], dtype=np.int64)       # host-resident lengths
    total = 16
    values = jax.random.randint(key, (total,), 0, 2**31 - 1, dtype=jnp.int32)
    feature = {"values": values, "weights": feature_split}

    # --- SINGLE_TTL_EVICTION ---
    single_ttl = 24
    mod_single = HashZchThresholdEvictionModuleJax(
        HashZchThresholdEvictionModuleJax.SINGLE_TTL_EVICTION,
        features=["f0", "f1", "f2"], single_ttl=single_ttl)
    score_s, thr_s = mod_single(feature)
    score_s = jax.block_until_ready(score_s)
    assert score_s.shape == (total,) and score_s.dtype == jnp.int32
    ref_s = np.full((total,), single_ttl + thr_s, dtype=np.int32)
    assert np.array_equal(np.asarray(score_s), ref_s), "single-ttl mismatch"
    assert thr_s > 0

    # --- PER_FEATURE_TTL_EVICTION (stripped (N,) contract path) ---
    per_feature_ttl = [24, 48, 72]
    mod_pf = HashZchThresholdEvictionModuleJax(
        HashZchThresholdEvictionModuleJax.PER_FEATURE_TTL_EVICTION,
        features=["f0", "f1", "f2"], per_feature_ttl=per_feature_ttl)
    score_pf, thr_pf = mod_pf(feature)
    score_pf = jax.block_until_ready(score_pf)
    assert score_pf.shape == (total,) and score_pf.dtype == jnp.int32
    ref_pf = np.repeat(np.asarray(per_feature_ttl, np.int64),
                       feature_split).astype(np.int32) + np.int32(thr_pf)
    assert np.array_equal(np.asarray(score_pf), ref_pf), "per-feature-ttl mismatch"

    # --- PER_FEATURE padded-slab path (no flatten+slice copy) ---
    padded = mod_pf(feature, return_padded=True)[0]
    padded = jax.block_until_ready(padded)
    assert padded.ndim == 2 and padded.shape[1] == _LANES
    # Note: indices >= total carry the last feature's value (documented).
    assert np.array_equal(np.asarray(padded).reshape(-1)[:total], ref_pf)

    # --- Larger per-feature case: exercises grid=2 + in-tile boundary narrowing ---
    big_split = np.array([10_000, 15_000, 5_000, 10_000], dtype=np.int64)
    big_total = int(big_split.sum())
    big_ttl = np.array([6, 12, 24, 48], dtype=np.int32)
    hour = int(time.time() / 3600)
    big_score = per_feature_ttl_score(big_split, big_ttl, hour, big_total)
    big_score = jax.block_until_ready(big_score)
    big_ref = np.repeat(big_ttl.astype(np.int64), big_split).astype(np.int32) + np.int32(hour)
    assert big_score.shape == (big_total,)
    assert np.array_equal(np.asarray(big_score), big_ref), "large per-feature mismatch"

    # --- LRU_EVICTION (same scorer as single TTL) ---
    mod_lru = HashZchThresholdEvictionModuleJax(
        HashZchThresholdEvictionModuleJax.LRU_EVICTION,
        features=["f0", "f1", "f2"], single_ttl=single_ttl)
    score_lru, thr_lru = mod_lru(feature)
    score_lru = jax.block_until_ready(score_lru)
    ref_lru = np.full((total,), single_ttl + thr_lru, dtype=np.int32)
    assert np.array_equal(np.asarray(score_lru), ref_lru), "lru mismatch"

    print("KERNEL_OK")
</pallas_src>

<mosaic_0001>
module attributes {stable_mosaic.version = 11 : i64} {
  func.func @_single_ttl_kernel(%arg0: i32, %arg1: memref<1xi32, #tpu.memory_space<smem>>, %arg2: memref<8x1024xi32, #tpu.memory_space<vmem>>) attributes {dimension_semantics = [#tpu.dimension_semantics<parallel>], iteration_bounds = array<i64: 1>, scalar_prefetch = 0 : i64, scratch_operands = 0 : i64, tpu.core_type = #tpu.core_type<tc>, window_params = [{transform_indices = @transform_0, window_bounds = array<i64: 1>}, {transform_indices = @transform_1, window_bounds = array<i64: 8, 1024>}]} {
    %c0 = arith.constant 0 : index
    %0 = memref.load %arg1[%c0] : memref<1xi32, #tpu.memory_space<smem>>
    %1 = vector.broadcast %0 : i32 to vector<8x1024xi32>
    %c0_0 = arith.constant 0 : index
    %c0_1 = arith.constant 0 : index
    %2 = vector.load %arg2[%c0_0, %c0_1] : memref<8x1024xi32, #tpu.memory_space<vmem>>, vector<8x1024xi32>
    tpu.vector_store %arg2[%c0_0, %c0_1], %1 {strides = array<i32>} : memref<8x1024xi32, #tpu.memory_space<vmem>>, vector<8x1024xi32>,
    return
  }
  func.func @transform_0(%arg0: i32) -> i32 {
    %c0_i32 = arith.constant 0 : i32
    %c0_i32_0 = arith.constant 0 : i32
    return %c0_i32 : i32
  }
  func.func @transform_1(%arg0: i32) -> (i32, i32) {
    %c0_i32 = arith.constant 0 : i32
    %c0_i32_0 = arith.constant 0 : i32
    return %arg0, %c0_i32 : i32, i32
  }
}

</mosaic_0001>

<llo_original>
// kernel: tpu_custom_call.1
$region0: #{tpu_custom_call.1}
  #allocation0 [shape = 'u32[]', space=smem, size = 0x4, offset = 0x4, fixed_abs, tag = 'smem constant byte address 0x4 - core index']
  #allocation1 [shape = 'u32[72,128]{1,0:T(1,128)}', space=vmem, size = 0x9000, scoped, tag = 'internal scratch']
  #allocation2 [shape = 's32[1]{0:T(128)S(6)}', space=smem, size = 0x200, scoped, tag = 'scoped memory for tpu_custom_call.1']
  %s0 = inlined_call_operand.<no memory space> [shape: s32[1], index: 0, kind: input, shape index: {}]
  %s1 = inlined_call_operand.hbm [shape: s32[8,1024], index: 1, kind: output, shape index: {}]
  %s2 = sld [smem:[#allocation0]]
  $region14: #{tpu_custom_call.1} parent=0
    _
  %s4 = ssub.s32 1, %s2
  %s5 = scalar_select 0, %s4, %s2
  %6 = sst [smem:[#allocation2]] %s0
  $region1: #{tpu_custom_call.1} parent=0
    #allocation3 [shape = 'u8[32768]{0}', space=vmem, size = 0x8000, scoped, tag = 'output window, operand 0, single buffered']
    #allocation4 [shape = 's32[1]{0}', space=sflag, size = 0x4, scoped, tag = 'scoped memory for tpu_custom_call.1']
    %7 = vsyncpa [#allocation4], 0
    // Predicated region
    $region2: #{tpu_custom_call.1} parent=1 // pred_check
      _
    $region3: #{tpu_custom_call.1} parent=1 // pred_check_branch
      %9 = sbr.rel (0) target = $region5
    $region4: #{tpu_custom_call.1} parent=1 // pred_region
      _
    $region5: #{tpu_custom_call.1} parent=1 // pred_fallthru
      _
    %s10 = sld [smem:[#allocation2]]
    %v11 = vstv %s10
    %12 = vst [vmem:[#allocation3] sm:$0xff] %v11
    %13 = vst [vmem:[#allocation3 + $0x8] sm:$0xff] %v11
    %14 = vst [vmem:[#allocation3 + $0x10] sm:$0xff] %v11
    %15 = vst [vmem:[#allocation3 + $0x18] sm:$0xff] %v11
    %16 = vst [vmem:[#allocation3 + $0x20] sm:$0xff] %v11
    %17 = vst [vmem:[#allocation3 + $0x28] sm:$0xff] %v11
    %18 = vst [vmem:[#allocation3 + $0x30] sm:$0xff] %v11
    %19 = vst [vmem:[#allocation3 + $0x38] sm:$0xff] %v11
    // Predicated region
    $region6: #{tpu_custom_call.1} parent=1 // pred_check
      _
    $region7: #{tpu_custom_call.1} parent=1 // pred_check_branch
      %21 = sbr.rel (0) target = $region9
    $region8: #{tpu_custom_call.1} parent=1 // pred_region
      %23 = vsyncadd [#allocation4], 0
      %s25 = sshll.u32 [#allocation3], 4
      %s26 = int_to_ptr.vmem [resolvable:$true] %s25
      %s27 = sshll.u32 %s1, 4
      %s28 = int_to_ptr.hbm [resolvable:$true] %s27
      %30 = dma.vmem_to_hbm [thread:$0]  %s26, 1024, %s28, [#allocation4]
    $region9: #{tpu_custom_call.1} parent=1 // pred_fallthru
      _
    // Predicated region
    $region10: #{tpu_custom_call.1} parent=1 // pred_check
      _
    $region11: #{tpu_custom_call.1} parent=1 // pred_check_branch
      %32 = sbr.rel (0) target = $region13
    $region12: #{tpu_custom_call.1} parent=1 // pred_region
      %34 = dma.done [#allocation4], 1024
    $region13: #{tpu_custom_call.1} parent=1 // pred_fallthru
      _
    %35 = vsyncpa [#allocation4], 1

</llo_original>
